<compile_context>
chip_gen: v7x
topology: tpu7x:2x2x1
jax: 0.10.0
libtpu: 0.0.40
codegen_flags: <defaults>
</compile_context>

<pallas_src>
import jax
import jax.numpy as jnp
from jax.experimental import pallas as pl
from jax.experimental.pallas import tpu as pltpu

HIDDEN = 32                       # layer width in the reference module
LANE = 128                        # TPU lane width / MXU edge we pad to
OUT_LANES = 128                   # packed [y ... h5] output slab width
H5_OFF = LANE - HIDDEN            # lane offset of h5 inside the slab (96)
VMEM_BUDGET = 24 * 1024 * 1024    # target working set (v7x-safe)


def _round_up(n, m):
    return ((n + m - 1) // m) * m


def _cdiv(a, b):
    return -(-a // b)


def _mlp_kernel(x_ref, w1_ref, ws_ref, b_ref, out_ref):
    """x_ref:(TB,input_dim) f32, w1_ref:(input_dim,128) bf16,
    ws_ref:(5,128,128) bf16, b_ref:(6,128) f32, out_ref:(TB,128) f32.

    Layer-5 weights/bias are packed with outputs at lanes [H5_OFF, H5_OFF+32)
    and layer-6 weights read their inputs from those lanes, so `y + h5` is a
    pure lane merge (disjoint nonzero lanes)."""
    b = b_ref[...]                                            # (6,128), resident

    # layer 1: bf16 operands, f32 accumulation (single-pass MXU)
    x = x_ref[...].astype(jnp.bfloat16)
    h = jnp.dot(x, w1_ref[...], preferred_element_type=jnp.float32)
    h = jnp.maximum(h + b[0:1, :], 0.0)

    # layers 2..5 (ReLU); layer 5's real lanes end up at [H5_OFF, H5_OFF+32)
    for i in range(4):
        h = jnp.dot(h.astype(jnp.bfloat16), ws_ref[i],
                    preferred_element_type=jnp.float32)
        h = jnp.maximum(h + b[i + 1:i + 2, :], 0.0)
    h5 = h

    # output layer (no ReLU); real lanes [0, output_dim)
    y = jnp.dot(h5.astype(jnp.bfloat16), ws_ref[4],
                preferred_element_type=jnp.float32) + b[5:6, :]

    out_ref[...] = (y + h5).astype(out_ref.dtype)             # one 128-lane store


def pack_params(params):
    """Pack the six (W, b) pairs once (hoisted out of the per-call path).

    Weights stored (in_features, out_features).  Returns
    (w1_pad bf16 (input_dim,128), ws bf16 (5,128,128), bs f32 (6,128),
     input_dim, output_dim)."""
    (w1, b1), (w2, b2), (w3, b3), (w4, b4), (w5, b5), (w6, b6) = params
    input_dim = w1.shape[0]
    output_dim = w6.shape[1]
    assert output_dim <= H5_OFF, "output_dim must fit below the h5 lane offset"

    bf = jnp.bfloat16
    w1_pad = jnp.zeros((input_dim, LANE), bf).at[:, :HIDDEN].set(w1.astype(bf))

    ws = jnp.zeros((5, LANE, LANE), bf)
    ws = ws.at[0, :HIDDEN, :HIDDEN].set(w2.astype(bf))
    ws = ws.at[1, :HIDDEN, :HIDDEN].set(w3.astype(bf))
    ws = ws.at[2, :HIDDEN, :HIDDEN].set(w4.astype(bf))
    # layer 5: outputs land at lanes [H5_OFF, H5_OFF+HIDDEN)
    ws = ws.at[3, :HIDDEN, H5_OFF:H5_OFF + HIDDEN].set(w5.astype(bf))
    # layer 6: inputs read from lanes [H5_OFF, H5_OFF+HIDDEN)
    ws = ws.at[4, H5_OFF:H5_OFF + HIDDEN, :output_dim].set(w6.astype(bf))

    bs = jnp.zeros((6, LANE), jnp.float32)
    for i, bvec in enumerate((b1, b2, b3, b4)):
        bs = bs.at[i, :HIDDEN].set(bvec.reshape(-1).astype(jnp.float32))
    bs = bs.at[4, H5_OFF:H5_OFF + HIDDEN].set(b5.reshape(-1).astype(jnp.float32))
    bs = bs.at[5, :output_dim].set(b6.reshape(-1).astype(jnp.float32))
    return w1_pad, ws, bs, input_dim, output_dim


def _choose_tiling(batch, input_dim):
    """Pick (TB, nb): batch-tile rows and grid length, sized for VMEM."""
    if batch <= 8:
        return batch, 1           # single full-extent block (== array dims: legal)

    # Per-row VMEM bytes: double-buffered f32 x tile, double-buffered f32 out
    # tile, plus a few live f32/bf16 activation temps.
    per_row = 2 * 4 * input_dim + 2 * 4 * OUT_LANES + 6 * 4 * LANE
    resident = 2 * input_dim * LANE + 5 * 2 * LANE * LANE + 6 * 4 * LANE
    avail = VMEM_BUDGET - resident
    if avail < 8 * per_row:
        # TODO(synk): K-tile layer 1 (extra "arbitrary" grid axis over input_dim
        # with a (TB,128) f32 accumulator) so W1 need not stay VMEM-resident
        # for very large input_dim.
        raise NotImplementedError(
            f"input_dim={input_dim} too large for the resident-W1 kernel")

    tb = min(8192, avail // per_row, batch)
    tb = max(8, (tb // 8) * 8)
    nb = _cdiv(batch, tb)
    if nb == 1 and batch >= 16:
        nb = 2                    # keep both v7x TensorCores busy
    tb = min(tb, _round_up(_cdiv(batch, nb), 8))   # balance tiles across steps
    nb = _cdiv(batch, tb)
    return tb, nb


def mlp_forward(x, packed):
    """x: [batch, ...] -> (y_pred [batch, output_dim], h5 [batch, HIDDEN])."""
    w1_pad, ws, bs, input_dim, output_dim = packed
    batch = x.shape[0]
    x2d = x.reshape(batch, -1).astype(jnp.float32)    # == x.view(batch, -1)
    assert x2d.shape[1] == input_dim

    tb, nb = _choose_tiling(batch, input_dim)

    out = pl.pallas_call(
        _mlp_kernel,
        out_shape=jax.ShapeDtypeStruct((batch, OUT_LANES), jnp.float32),
        grid=(nb,),
        in_specs=[
            pl.BlockSpec((tb, input_dim), lambda bi: (bi, 0)),     # streamed x
            pl.BlockSpec((input_dim, LANE), lambda bi: (0, 0)),    # resident W1
            pl.BlockSpec((5, LANE, LANE), lambda bi: (0, 0, 0)),   # resident W2..W6
            pl.BlockSpec((6, LANE), lambda bi: (0, 0)),            # resident biases
        ],
        out_specs=pl.BlockSpec((tb, OUT_LANES), lambda bi: (bi, 0)),
        compiler_params=pltpu.CompilerParams(
            dimension_semantics=("parallel",),
            vmem_limit_bytes=32 * 1024 * 1024,
        ),
    )(x2d, w1_pad, ws, bs)

    y_pred = out[:, :output_dim]
    h5 = out[:, H5_OFF:H5_OFF + HIDDEN]
    return y_pred, h5


def init_params(key, input_dim, output_dim):
    """Deterministic init mimicking nn.Linear's U(-1/sqrt(fan_in), +).

    Weights stored transposed: (in_features, out_features); biases (1, out)."""
    dims = [(input_dim, HIDDEN)] + [(HIDDEN, HIDDEN)] * 4 + [(HIDDEN, output_dim)]
    params = []
    for fan_in, fan_out in dims:
        key, kw, kb = jax.random.split(key, 3)
        bound = 1.0 / jnp.sqrt(fan_in)
        w = jax.random.uniform(kw, (fan_in, fan_out), jnp.float32, -bound, bound)
        b = jax.random.uniform(kb, (1, fan_out), jnp.float32, -bound, bound)
        params.append((w, b))
    return params


def _reference(x, params):
    """Plain-JAX reference using the same bf16-operand / f32-accumulate dots."""
    h = x.reshape(x.shape[0], -1).astype(jnp.float32)
    h5 = None
    n = len(params)
    for i, (w, b) in enumerate(params):
        z = jnp.dot(h.astype(jnp.bfloat16), w.astype(jnp.bfloat16),
                    preferred_element_type=jnp.float32) + b
        if i < n - 1:
            z = jnp.maximum(z, 0.0)
        if i == n - 2:
            h5 = z
        h = z
    return h, h5


if __name__ == "__main__":
    key = jax.random.PRNGKey(0)
    k_in, k_par = jax.random.split(key)

    # Small "image-like" input: batch=2, 4 channels, 16x16 spatial ->
    # input_dim = 1024, output_dim = 10.
    batch, c, hgt, wid = 2, 4, 16, 16
    input_dim = c * hgt * wid
    output_dim = 10

    x = jax.random.normal(k_in, (batch, c, hgt, wid), dtype=jnp.float32)
    params = init_params(k_par, input_dim, output_dim)
    packed = pack_params(params)           # packed once, outside the hot path

    y_pred, h5 = mlp_forward(x, packed)
    y_pred = jax.block_until_ready(y_pred)
    h5 = jax.block_until_ready(h5)

    y_ref, h5_ref = _reference(x, params)
    assert y_pred.shape == (batch, output_dim)
    assert h5.shape == (batch, HIDDEN)
    assert jnp.allclose(y_pred, y_ref, atol=1e-2, rtol=1e-2), (
        float(jnp.max(jnp.abs(y_pred - y_ref))))
    assert jnp.allclose(h5, h5_ref, atol=1e-2, rtol=1e-2), (
        float(jnp.max(jnp.abs(h5 - h5_ref))))

    print("KERNEL_OK")
</pallas_src>

<mosaic_0001>
module attributes {stable_mosaic.version = 11 : i64} {
  func.func @_mlp_kernel(%arg0: i32, %arg1: memref<2x1024xf32, #tpu.memory_space<vmem>>, %arg2: memref<1024x128xbf16, #tpu.memory_space<vmem>>, %arg3: memref<5x128x128xbf16, #tpu.memory_space<vmem>>, %arg4: memref<6x128xf32, #tpu.memory_space<vmem>>, %arg5: memref<2x128xf32, #tpu.memory_space<vmem>>) attributes {dimension_semantics = [#tpu.dimension_semantics<parallel>], iteration_bounds = array<i64: 1>, scalar_prefetch = 0 : i64, scratch_operands = 0 : i64, tpu.core_type = #tpu.core_type<tc>, window_params = [{transform_indices = @transform_0, window_bounds = array<i64: 2, 1024>}, {pipeline_mode = #tpu.pipeline_mode<synchronous>, transform_indices = @transform_1, window_bounds = array<i64: 1024, 128>}, {pipeline_mode = #tpu.pipeline_mode<synchronous>, transform_indices = @transform_2, window_bounds = array<i64: 5, 128, 128>}, {pipeline_mode = #tpu.pipeline_mode<synchronous>, transform_indices = @transform_3, window_bounds = array<i64: 6, 128>}, {transform_indices = @transform_4, window_bounds = array<i64: 2, 128>}]} {
    %c0 = arith.constant 0 : index
    %c0_0 = arith.constant 0 : index
    %0 = vector.load %arg4[%c0, %c0_0] : memref<6x128xf32, #tpu.memory_space<vmem>>, vector<6x128xf32>
    %c0_1 = arith.constant 0 : index
    %c0_2 = arith.constant 0 : index
    %1 = vector.load %arg1[%c0_1, %c0_2] : memref<2x1024xf32, #tpu.memory_space<vmem>>, vector<2x1024xf32>
    %2 = arith.truncf %1 : vector<2x1024xf32> to vector<2x1024xbf16>
    %c0_3 = arith.constant 0 : index
    %c0_4 = arith.constant 0 : index
    %3 = vector.load %arg2[%c0_3, %c0_4] : memref<1024x128xbf16, #tpu.memory_space<vmem>>, vector<1024x128xbf16>
    %cst = arith.constant dense<0.000000e+00> : vector<2x128xf32>
    %4 = tpu.matmul %2, %3, %cst {dimension_numbers = #tpu.dot_dimension_numbers<[1], [0], [0], [1], [0, 0, 1, 1], [], []>} : vector<2x1024xbf16>, vector<1024x128xbf16>, vector<2x128xf32> -> vector<2x128xf32>
    %5 = vector.extract_strided_slice %0 {offsets = [0, 0], sizes = [1, 128], strides = [1, 1]} : vector<6x128xf32> to vector<1x128xf32>
    %6 = vector.broadcast %5 : vector<1x128xf32> to vector<2x128xf32>
    %7 = arith.addf %4, %6 : vector<2x128xf32>
    %cst_5 = arith.constant 0.000000e+00 : f32
    %8 = vector.broadcast %cst_5 : f32 to vector<2x128xf32>
    %9 = arith.maximumf %7, %8 : vector<2x128xf32>
    %10 = arith.truncf %9 : vector<2x128xf32> to vector<2x128xbf16>
    %c0_6 = arith.constant 0 : index
    %c0_7 = arith.constant 0 : index
    %c0_8 = arith.constant 0 : index
    %11 = vector.load %arg3[%c0_6, %c0_7, %c0_8] : memref<5x128x128xbf16, #tpu.memory_space<vmem>>, vector<1x128x128xbf16>
    %12 = vector.shape_cast %11 : vector<1x128x128xbf16> to vector<128x128xbf16>
    %cst_9 = arith.constant dense<0.000000e+00> : vector<2x128xf32>
    %13 = tpu.matmul %10, %12, %cst_9 {dimension_numbers = #tpu.dot_dimension_numbers<[1], [0], [0], [1], [0, 0, 1, 1], [], []>} : vector<2x128xbf16>, vector<128x128xbf16>, vector<2x128xf32> -> vector<2x128xf32>
    %14 = vector.extract_strided_slice %0 {offsets = [1, 0], sizes = [1, 128], strides = [1, 1]} : vector<6x128xf32> to vector<1x128xf32>
    %15 = vector.broadcast %14 : vector<1x128xf32> to vector<2x128xf32>
    %16 = arith.addf %13, %15 : vector<2x128xf32>
    %cst_10 = arith.constant 0.000000e+00 : f32
    %17 = vector.broadcast %cst_10 : f32 to vector<2x128xf32>
    %18 = arith.maximumf %16, %17 : vector<2x128xf32>
    %19 = arith.truncf %18 : vector<2x128xf32> to vector<2x128xbf16>
    %c1 = arith.constant 1 : index
    %c0_11 = arith.constant 0 : index
    %c0_12 = arith.constant 0 : index
    %20 = vector.load %arg3[%c1, %c0_11, %c0_12] : memref<5x128x128xbf16, #tpu.memory_space<vmem>>, vector<1x128x128xbf16>
    %21 = vector.shape_cast %20 : vector<1x128x128xbf16> to vector<128x128xbf16>
    %cst_13 = arith.constant dense<0.000000e+00> : vector<2x128xf32>
    %22 = tpu.matmul %19, %21, %cst_13 {dimension_numbers = #tpu.dot_dimension_numbers<[1], [0], [0], [1], [0, 0, 1, 1], [], []>} : vector<2x128xbf16>, vector<128x128xbf16>, vector<2x128xf32> -> vector<2x128xf32>
    %23 = vector.extract_strided_slice %0 {offsets = [2, 0], sizes = [1, 128], strides = [1, 1]} : vector<6x128xf32> to vector<1x128xf32>
    %24 = vector.broadcast %23 : vector<1x128xf32> to vector<2x128xf32>
    %25 = arith.addf %22, %24 : vector<2x128xf32>
    %cst_14 = arith.constant 0.000000e+00 : f32
    %26 = vector.broadcast %cst_14 : f32 to vector<2x128xf32>
    %27 = arith.maximumf %25, %26 : vector<2x128xf32>
    %28 = arith.truncf %27 : vector<2x128xf32> to vector<2x128xbf16>
    %c2 = arith.constant 2 : index
    %c0_15 = arith.constant 0 : index
    %c0_16 = arith.constant 0 : index
    %29 = vector.load %arg3[%c2, %c0_15, %c0_16] : memref<5x128x128xbf16, #tpu.memory_space<vmem>>, vector<1x128x128xbf16>
    %30 = vector.shape_cast %29 : vector<1x128x128xbf16> to vector<128x128xbf16>
    %cst_17 = arith.constant dense<0.000000e+00> : vector<2x128xf32>
    %31 = tpu.matmul %28, %30, %cst_17 {dimension_numbers = #tpu.dot_dimension_numbers<[1], [0], [0], [1], [0, 0, 1, 1], [], []>} : vector<2x128xbf16>, vector<128x128xbf16>, vector<2x128xf32> -> vector<2x128xf32>
    %32 = vector.extract_strided_slice %0 {offsets = [3, 0], sizes = [1, 128], strides = [1, 1]} : vector<6x128xf32> to vector<1x128xf32>
    %33 = vector.broadcast %32 : vector<1x128xf32> to vector<2x128xf32>
    %34 = arith.addf %31, %33 : vector<2x128xf32>
    %cst_18 = arith.constant 0.000000e+00 : f32
    %35 = vector.broadcast %cst_18 : f32 to vector<2x128xf32>
    %36 = arith.maximumf %34, %35 : vector<2x128xf32>
    %37 = arith.truncf %36 : vector<2x128xf32> to vector<2x128xbf16>
    %c3 = arith.constant 3 : index
    %c0_19 = arith.constant 0 : index
    %c0_20 = arith.constant 0 : index
    %38 = vector.load %arg3[%c3, %c0_19, %c0_20] : memref<5x128x128xbf16, #tpu.memory_space<vmem>>, vector<1x128x128xbf16>
    %39 = vector.shape_cast %38 : vector<1x128x128xbf16> to vector<128x128xbf16>
    %cst_21 = arith.constant dense<0.000000e+00> : vector<2x128xf32>
    %40 = tpu.matmul %37, %39, %cst_21 {dimension_numbers = #tpu.dot_dimension_numbers<[1], [0], [0], [1], [0, 0, 1, 1], [], []>} : vector<2x128xbf16>, vector<128x128xbf16>, vector<2x128xf32> -> vector<2x128xf32>
    %41 = vector.extract_strided_slice %0 {offsets = [4, 0], sizes = [1, 128], strides = [1, 1]} : vector<6x128xf32> to vector<1x128xf32>
    %42 = vector.broadcast %41 : vector<1x128xf32> to vector<2x128xf32>
    %43 = arith.addf %40, %42 : vector<2x128xf32>
    %cst_22 = arith.constant 0.000000e+00 : f32
    %44 = vector.broadcast %cst_22 : f32 to vector<2x128xf32>
    %45 = arith.maximumf %43, %44 : vector<2x128xf32>
    %46 = arith.truncf %45 : vector<2x128xf32> to vector<2x128xbf16>
    %c4 = arith.constant 4 : index
    %c0_23 = arith.constant 0 : index
    %c0_24 = arith.constant 0 : index
    %47 = vector.load %arg3[%c4, %c0_23, %c0_24] : memref<5x128x128xbf16, #tpu.memory_space<vmem>>, vector<1x128x128xbf16>
    %48 = vector.shape_cast %47 : vector<1x128x128xbf16> to vector<128x128xbf16>
    %cst_25 = arith.constant dense<0.000000e+00> : vector<2x128xf32>
    %49 = tpu.matmul %46, %48, %cst_25 {dimension_numbers = #tpu.dot_dimension_numbers<[1], [0], [0], [1], [0, 0, 1, 1], [], []>} : vector<2x128xbf16>, vector<128x128xbf16>, vector<2x128xf32> -> vector<2x128xf32>
    %50 = vector.extract_strided_slice %0 {offsets = [5, 0], sizes = [1, 128], strides = [1, 1]} : vector<6x128xf32> to vector<1x128xf32>
    %51 = vector.broadcast %50 : vector<1x128xf32> to vector<2x128xf32>
    %52 = arith.addf %49, %51 : vector<2x128xf32>
    %53 = arith.addf %52, %45 : vector<2x128xf32>
    %c0_26 = arith.constant 0 : index
    %c0_27 = arith.constant 0 : index
    %54 = vector.load %arg5[%c0_26, %c0_27] : memref<2x128xf32, #tpu.memory_space<vmem>>, vector<2x128xf32>
    tpu.vector_store %arg5[%c0_26, %c0_27], %53 {strides = array<i32>} : memref<2x128xf32, #tpu.memory_space<vmem>>, vector<2x128xf32>,
    return
  }
  func.func @transform_0(%arg0: i32) -> (i32, i32) {
    %c0_i32 = arith.constant 0 : i32
    %c0_i32_0 = arith.constant 0 : i32
    return %arg0, %c0_i32 : i32, i32
  }
  func.func @transform_1(%arg0: i32) -> (i32, i32) {
    %c0_i32 = arith.constant 0 : i32
    %c0_i32_0 = arith.constant 0 : i32
    %c0_i32_1 = arith.constant 0 : i32
    return %c0_i32, %c0_i32_0 : i32, i32
  }
  func.func @transform_2(%arg0: i32) -> (i32, i32, i32) {
    %c0_i32 = arith.constant 0 : i32
    %c0_i32_0 = arith.constant 0 : i32
    %c0_i32_1 = arith.constant 0 : i32
    %c0_i32_2 = arith.constant 0 : i32
    return %c0_i32, %c0_i32_0, %c0_i32_1 : i32, i32, i32
  }
  func.func @transform_3(%arg0: i32) -> (i32, i32) {
    %c0_i32 = arith.constant 0 : i32
    %c0_i32_0 = arith.constant 0 : i32
    %c0_i32_1 = arith.constant 0 : i32
    return %c0_i32, %c0_i32_0 : i32, i32
  }
  func.func @transform_4(%arg0: i32) -> (i32, i32) {
    %c0_i32 = arith.constant 0 : i32
    %c0_i32_0 = arith.constant 0 : i32
    return %arg0, %c0_i32 : i32, i32
  }
}

</mosaic_0001>

<llo_original>
// kernel: tpu_custom_call.1
$region0: #{tpu_custom_call.1}
  #allocation0 [shape = 'u32[]', space=smem, size = 0x4, offset = 0x4, fixed_abs, tag = 'smem constant byte address 0x4 - core index']
  #allocation1 [shape = 'u32[144,128]{1,0:T(1,128)}', space=vmem, size = 0x12000, scoped, tag = 'internal scratch']
  %s0 = inlined_call_operand.hbm [shape: f32[2,1024], index: 0, kind: input, shape index: {}]
  %s1 = inlined_call_operand.hbm [shape: bf16[1024,128], index: 1, kind: input, shape index: {}]
  %s2 = inlined_call_operand.hbm [shape: bf16[5,128,128], index: 2, kind: input, shape index: {}]
  %s3 = inlined_call_operand.vmem [shape: f32[6,128], index: 3, kind: input, shape index: {}]
  %s4 = inlined_call_operand.hbm [shape: f32[2,128], index: 4, kind: output, shape index: {}]
  %s5 = sld [smem:[#allocation0]]
  $region38: #{tpu_custom_call.1} parent=0
    _
  %s7 = ssub.s32 1, %s5
  %s8 = scalar_select 0, %s7, %s5
  $region1: #{tpu_custom_call.1} parent=0
    #allocation2 [shape = 'u8[8192]{0}', space=vmem, size = 0x2000, scoped, tag = 'input window, operand 0, single buffered']
    #allocation3 [shape = 's32[1]{0}', space=sflag, size = 0x4, scoped, tag = 'scoped memory for tpu_custom_call.1']
    #allocation4 [shape = 's32[1]{0}', space=sflag, size = 0x4, scoped, tag = 'scoped memory for tpu_custom_call.1']
    #allocation5 [shape = 'u8[262144]{0}', space=vmem, size = 0x40000, scoped, tag = 'input window, operand 1, single buffered']
    #allocation6 [shape = 's32[1]{0}', space=sflag, size = 0x4, scoped, tag = 'scoped memory for tpu_custom_call.1']
    #allocation7 [shape = 'u8[163840]{0}', space=vmem, size = 0x28000, scoped, tag = 'input window, operand 2, single buffered']
    #allocation8 [shape = 'u8[1024]{0}', space=vmem, size = 0x400, scoped, tag = 'output window, operand 0, single buffered']
    %9 = vsyncpa [#allocation3], 0
    %10 = vsyncpa [#allocation6], 0
    %11 = vsyncpa [#allocation4], 0
    // Predicated region
    $region2: #{tpu_custom_call.1} parent=1 // pred_check
      _
    $region3: #{tpu_custom_call.1} parent=1 // pred_check_branch
      %13 = sbr.rel (0) target = $region5
    $region4: #{tpu_custom_call.1} parent=1 // pred_region
      %s15 = ssub.s32 256, 256
      %16 = vsyncadd [#allocation3], %s15
      %s18 = sshll.u32 [#allocation2], 4
      %s19 = int_to_ptr.vmem [resolvable:$true] %s18
      %21 = dma.hbm_to_vmem [thread:$0]  %s0, 256, %s19, [#allocation3]
    $region5: #{tpu_custom_call.1} parent=1 // pred_fallthru
      _
    // Predicated region
    $region6: #{tpu_custom_call.1} parent=1 // pred_check
      _
    $region7: #{tpu_custom_call.1} parent=1 // pred_check_branch
      %23 = sbr.rel (0) target = $region9
    $region8: #{tpu_custom_call.1} parent=1 // pred_region
      %s25 = ssub.s32 8192, 8192
      %26 = vsyncadd [#allocation6], %s25
      %s27 = sshll.u32 [#allocation5], 4
      %s28 = int_to_ptr.vmem [resolvable:$true] %s27
      %33 = dma.hbm_to_vmem [thread:$0]  %s1, 8192, %s28, [#allocation6], 64, 64, 4
    $region9: #{tpu_custom_call.1} parent=1 // pred_fallthru
      _
    // Predicated region
    $region10: #{tpu_custom_call.1} parent=1 // pred_check
      _
    $region11: #{tpu_custom_call.1} parent=1 // pred_check_branch
      %35 = sbr.rel (0) target = $region13
    $region12: #{tpu_custom_call.1} parent=1 // pred_region
      %s37 = ssub.s32 5120, 5120
      %38 = vsyncadd [#allocation6], %s37
      %s39 = sshll.u32 [#allocation7], 4
      %s40 = int_to_ptr.vmem [resolvable:$true] %s39
      %45 = dma.hbm_to_vmem [thread:$0]  %s2, 5120, %s40, [#allocation6], 64, 64, 4
    $region13: #{tpu_custom_call.1} parent=1 // pred_fallthru
      _
    // Predicated region
    $region14: #{tpu_custom_call.1} parent=1 // pred_check
      _
    $region15: #{tpu_custom_call.1} parent=1 // pred_check_branch
      %47 = sbr.rel (0) target = $region17
    $region16: #{tpu_custom_call.1} parent=1 // pred_region
      _
    $region17: #{tpu_custom_call.1} parent=1 // pred_fallthru
      _
    // Predicated region
    $region18: #{tpu_custom_call.1} parent=1 // pred_check
      _
    $region19: #{tpu_custom_call.1} parent=1 // pred_check_branch
      %49 = sbr.rel (0) target = $region21
    $region20: #{tpu_custom_call.1} parent=1 // pred_region
      %50 = dma.done [#allocation3], 256
    $region21: #{tpu_custom_call.1} parent=1 // pred_fallthru
      _
    // Predicated region
    $region22: #{tpu_custom_call.1} parent=1 // pred_check
      _
    $region23: #{tpu_custom_call.1} parent=1 // pred_check_branch
      %52 = sbr.rel (0) target = $region25
    $region24: #{tpu_custom_call.1} parent=1 // pred_region
      %53 = dma.done [#allocation6], 8192
    $region25: #{tpu_custom_call.1} parent=1 // pred_fallthru
      _
    // Predicated region
    $region26: #{tpu_custom_call.1} parent=1 // pred_check
      _
    $region27: #{tpu_custom_call.1} parent=1 // pred_check_branch
      %55 = sbr.rel (0) target = $region29
    $region28: #{tpu_custom_call.1} parent=1 // pred_region
      %56 = dma.done [#allocation6], 5120
    $region29: #{tpu_custom_call.1} parent=1 // pred_fallthru
      _
    %v58 = vld [vmem:[%s3] sm:$0x3f]
    %v59 = vld [vmem:[#allocation2] sm:$0xff]
    %v60 = vld [vmem:[#allocation2 + $0x8] sm:$0xff]
    %v63 = vcombine.high %v59, %v59
    %v65 = vunpack.c.l.s4 1983009808
    %v66 = vunpack.c.0.s8 %v65
    %v67 = vlaneseq
    %v68 = vshrl.u32 %v67, 7
    %v69 = vsub.s32 %v66, %v68
    %v70 = vrot.slane %v59, %v69
    %v72 = vunpack.c.l.s4 1983009808
    %v73 = vunpack.c.0.s8 %v72
    %v74 = vlaneseq
    %v75 = vshrl.u32 %v74, 7
    %v76 = vsub.s32 %v73, %v75
    %v77 = vrot.slane %v63, %v76
    %v78 = vcombine.high %v70, %v70
    %v79 = vcombine.high %v77, %v77
    %v80 = vcombine.high %v60, %v60
    %v82 = vunpack.c.l.s4 1983009808
    %v83 = vunpack.c.0.s8 %v82
    %v84 = vlaneseq
    %v85 = vshrl.u32 %v84, 7
    %v86 = vsub.s32 %v83, %v85
    %v87 = vrot.slane %v60, %v86
    %v89 = vunpack.c.l.s4 1983009808
    %v90 = vunpack.c.0.s8 %v89
    %v91 = vlaneseq
    %v92 = vshrl.u32 %v91, 7
    %v93 = vsub.s32 %v90, %v92
    %v94 = vrot.slane %v80, %v93
    %v95 = vcombine.high %v87, %v87
    %v96 = vcombine.high %v94, %v94
    %v105 = vpack.c.bf16 %v70, %v70
    %v106 = vpack.c.bf16 %v78, %v78
    %v107 = vpack.c.bf16 %v77, %v77
    %v108 = vpack.c.bf16 %v79, %v79
    %v109 = vpack.c.bf16 %v87, %v87
    %v110 = vpack.c.bf16 %v95, %v95
    %v111 = vpack.c.bf16 %v94, %v94
    %v112 = vpack.c.bf16 %v96, %v96
    %v113 = vld [vmem:[#allocation5] sm:$0xf]
    %v114 = vld [vmem:[#allocation5 + $0x4] sm:$0xf]
    %v115 = vld [vmem:[#allocation5 + $0x8] sm:$0xf]
    %v116 = vld [vmem:[#allocation5 + $0xc] sm:$0xf]
    %v117 = vld [vmem:[#allocation5 + $0x10] sm:$0xf]
    %v118 = vld [vmem:[#allocation5 + $0x14] sm:$0xf]
    %v119 = vld [vmem:[#allocation5 + $0x18] sm:$0xf]
    %v120 = vld [vmem:[#allocation5 + $0x1c] sm:$0xf]
    %v121 = vld [vmem:[#allocation5 + $0x20] sm:$0xf]
    %v122 = vld [vmem:[#allocation5 + $0x24] sm:$0xf]
    %v123 = vld [vmem:[#allocation5 + $0x28] sm:$0xf]
    %v124 = vld [vmem:[#allocation5 + $0x2c] sm:$0xf]
    %v125 = vld [vmem:[#allocation5 + $0x30] sm:$0xf]
    %v126 = vld [vmem:[#allocation5 + $0x34] sm:$0xf]
    %v127 = vld [vmem:[#allocation5 + $0x38] sm:$0xf]
    %v128 = vld [vmem:[#allocation5 + $0x3c] sm:$0xf]
    %v129 = vld [vmem:[#allocation5 + $0x40] sm:$0xf]
    %v130 = vld [vmem:[#allocation5 + $0x44] sm:$0xf]
    %v131 = vld [vmem:[#allocation5 + $0x48] sm:$0xf]
    %v132 = vld [vmem:[#allocation5 + $0x4c] sm:$0xf]
    %v133 = vld [vmem:[#allocation5 + $0x50] sm:$0xf]
    %v134 = vld [vmem:[#allocation5 + $0x54] sm:$0xf]
    %v135 = vld [vmem:[#allocation5 + $0x58] sm:$0xf]
    %v136 = vld [vmem:[#allocation5 + $0x5c] sm:$0xf]
    %v137 = vld [vmem:[#allocation5 + $0x60] sm:$0xf]
    %v138 = vld [vmem:[#allocation5 + $0x64] sm:$0xf]
    %v139 = vld [vmem:[#allocation5 + $0x68] sm:$0xf]
    %v140 = vld [vmem:[#allocation5 + $0x6c] sm:$0xf]
    %v141 = vld [vmem:[#allocation5 + $0x70] sm:$0xf]
    %v142 = vld [vmem:[#allocation5 + $0x74] sm:$0xf]
    %v143 = vld [vmem:[#allocation5 + $0x78] sm:$0xf]
    %v144 = vld [vmem:[#allocation5 + $0x7c] sm:$0xf]
    %v145 = vld [vmem:[#allocation5 + $0x80] sm:$0xf]
    %v146 = vld [vmem:[#allocation5 + $0x84] sm:$0xf]
    %v147 = vld [vmem:[#allocation5 + $0x88] sm:$0xf]
    %v148 = vld [vmem:[#allocation5 + $0x8c] sm:$0xf]
    %v149 = vld [vmem:[#allocation5 + $0x90] sm:$0xf]
    %v150 = vld [vmem:[#allocation5 + $0x94] sm:$0xf]
    %v151 = vld [vmem:[#allocation5 + $0x98] sm:$0xf]
    %v152 = vld [vmem:[#allocation5 + $0x9c] sm:$0xf]
    %v153 = vld [vmem:[#allocation5 + $0xa0] sm:$0xf]
    %v154 = vld [vmem:[#allocation5 + $0xa4] sm:$0xf]
    %v155 = vld [vmem:[#allocation5 + $0xa8] sm:$0xf]
    %v156 = vld [vmem:[#allocation5 + $0xac] sm:$0xf]
    %v157 = vld [vmem:[#allocation5 + $0xb0] sm:$0xf]
    %v158 = vld [vmem:[#allocation5 + $0xb4] sm:$0xf]
    %v159 = vld [vmem:[#allocation5 + $0xb8] sm:$0xf]
    %v160 = vld [vmem:[#allocation5 + $0xbc] sm:$0xf]
    %v161 = vld [vmem:[#allocation5 + $0xc0] sm:$0xf]
    %v162 = vld [vmem:[#allocation5 + $0xc4] sm:$0xf]
    %v163 = vld [vmem:[#allocation5 + $0xc8] sm:$0xf]
    %v164 = vld [vmem:[#allocation5 + $0xcc] sm:$0xf]
    %v165 = vld [vmem:[#allocation5 + $0xd0] sm:$0xf]
    %v166 = vld [vmem:[#allocation5 + $0xd4] sm:$0xf]
    %v167 = vld [vmem:[#allocation5 + $0xd8] sm:$0xf]
    %v168 = vld [vmem:[#allocation5 + $0xdc] sm:$0xf]
    %v169 = vld [vmem:[#allocation5 + $0xe0] sm:$0xf]
    %v170 = vld [vmem:[#allocation5 + $0xe4] sm:$0xf]
    %v171 = vld [vmem:[#allocation5 + $0xe8] sm:$0xf]
    %v172 = vld [vmem:[#allocation5 + $0xec] sm:$0xf]
    %v173 = vld [vmem:[#allocation5 + $0xf0] sm:$0xf]
    %v174 = vld [vmem:[#allocation5 + $0xf4] sm:$0xf]
    %v175 = vld [vmem:[#allocation5 + $0xf8] sm:$0xf]
    %v176 = vld [vmem:[#allocation5 + $0xfc] sm:$0xf]
    %v177 = vld [vmem:[#allocation5 + $0x100] sm:$0xf]
    %v178 = vld [vmem:[#allocation5 + $0x104] sm:$0xf]
    %v179 = vld [vmem:[#allocation5 + $0x108] sm:$0xf]
    %v180 = vld [vmem:[#allocation5 + $0x10c] sm:$0xf]
    %v181 = vld [vmem:[#allocation5 + $0x110] sm:$0xf]
    %v182 = vld [vmem:[#allocation5 + $0x114] sm:$0xf]
    %v183 = vld [vmem:[#allocation5 + $0x118] sm:$0xf]
    %v184 = vld [vmem:[#allocation5 + $0x11c] sm:$0xf]
    %v185 = vld [vmem:[#allocation5 + $0x120] sm:$0xf]
    %v186 = vld [vmem:[#allocation5 + $0x124] sm:$0xf]
    %v187 = vld [vmem:[#allocation5 + $0x128] sm:$0xf]
    %v188 = vld [vmem:[#allocation5 + $0x12c] sm:$0xf]
    %v189 = vld [vmem:[#allocation5 + $0x130] sm:$0xf]
    %v190 = vld [vmem:[#allocation5 + $0x134] sm:$0xf]
    %v191 = vld [vmem:[#allocation5 + $0x138] sm:$0xf]
    %v192 = vld [vmem:[#allocation5 + $0x13c] sm:$0xf]
    %v193 = vld [vmem:[#allocation5 + $0x140] sm:$0xf]
    %v194 = vld [vmem:[#allocation5 + $0x144] sm:$0xf]
    %v195 = vld [vmem:[#allocation5 + $0x148] sm:$0xf]
    %v196 = vld [vmem:[#allocation5 + $0x14c] sm:$0xf]
    %v197 = vld [vmem:[#allocation5 + $0x150] sm:$0xf]
    %v198 = vld [vmem:[#allocation5 + $0x154] sm:$0xf]
    %v199 = vld [vmem:[#allocation5 + $0x158] sm:$0xf]
    %v200 = vld [vmem:[#allocation5 + $0x15c] sm:$0xf]
    %v201 = vld [vmem:[#allocation5 + $0x160] sm:$0xf]
    %v202 = vld [vmem:[#allocation5 + $0x164] sm:$0xf]
    %v203 = vld [vmem:[#allocation5 + $0x168] sm:$0xf]
    %v204 = vld [vmem:[#allocation5 + $0x16c] sm:$0xf]
    %v205 = vld [vmem:[#allocation5 + $0x170] sm:$0xf]
    %v206 = vld [vmem:[#allocation5 + $0x174] sm:$0xf]
    %v207 = vld [vmem:[#allocation5 + $0x178] sm:$0xf]
    %v208 = vld [vmem:[#allocation5 + $0x17c] sm:$0xf]
    %v209 = vld [vmem:[#allocation5 + $0x180] sm:$0xf]
    %v210 = vld [vmem:[#allocation5 + $0x184] sm:$0xf]
    %v211 = vld [vmem:[#allocation5 + $0x188] sm:$0xf]
    %v212 = vld [vmem:[#allocation5 + $0x18c] sm:$0xf]
    %v213 = vld [vmem:[#allocation5 + $0x190] sm:$0xf]
    %v214 = vld [vmem:[#allocation5 + $0x194] sm:$0xf]
    %v215 = vld [vmem:[#allocation5 + $0x198] sm:$0xf]
    %v216 = vld [vmem:[#allocation5 + $0x19c] sm:$0xf]
    %v217 = vld [vmem:[#allocation5 + $0x1a0] sm:$0xf]
    %v218 = vld [vmem:[#allocation5 + $0x1a4] sm:$0xf]
    %v219 = vld [vmem:[#allocation5 + $0x1a8] sm:$0xf]
    %v220 = vld [vmem:[#allocation5 + $0x1ac] sm:$0xf]
    %v221 = vld [vmem:[#allocation5 + $0x1b0] sm:$0xf]
    %v222 = vld [vmem:[#allocation5 + $0x1b4] sm:$0xf]
    %v223 = vld [vmem:[#allocation5 + $0x1b8] sm:$0xf]
    %v224 = vld [vmem:[#allocation5 + $0x1bc] sm:$0xf]
    %v225 = vld [vmem:[#allocation5 + $0x1c0] sm:$0xf]
    %v226 = vld [vmem:[#allocation5 + $0x1c4] sm:$0xf]
    %v227 = vld [vmem:[#allocation5 + $0x1c8] sm:$0xf]
    %v228 = vld [vmem:[#allocation5 + $0x1cc] sm:$0xf]
    %v229 = vld [vmem:[#allocation5 + $0x1d0] sm:$0xf]
    %v230 = vld [vmem:[#allocation5 + $0x1d4] sm:$0xf]
    %v231 = vld [vmem:[#allocation5 + $0x1d8] sm:$0xf]
    %v232 = vld [vmem:[#allocation5 + $0x1dc] sm:$0xf]
    %v233 = vld [vmem:[#allocation5 + $0x1e0] sm:$0xf]
    %v234 = vld [vmem:[#allocation5 + $0x1e4] sm:$0xf]
    %v235 = vld [vmem:[#allocation5 + $0x1e8] sm:$0xf]
    %v236 = vld [vmem:[#allocation5 + $0x1ec] sm:$0xf]
    %v237 = vld [vmem:[#allocation5 + $0x1f0] sm:$0xf]
    %v238 = vld [vmem:[#allocation5 + $0x1f4] sm:$0xf]
    %v239 = vld [vmem:[#allocation5 + $0x1f8] sm:$0xf]
    %v240 = vld [vmem:[#allocation5 + $0x1fc] sm:$0xf]
    %v241 = vlaneseq
    %v242 = vshrl.u32 %v241, 7
    %v243 = vsub.s32 0, %v242
    %v244 = vrot.slane %v58, %v243
    %v373 = vunpack.c.l.b16 %v113
    %v374 = vunpack.c.l.b16 %v114
    %v375 = vunpack.c.l.b16 %v115
    %v376 = vunpack.c.l.b16 %v116
    %v377 = vunpack.c.l.b16 %v117
    %v378 = vunpack.c.l.b16 %v118
    %v379 = vunpack.c.l.b16 %v119
    %v380 = vunpack.c.l.b16 %v120
    %v381 = vunpack.c.l.b16 %v121
    %v382 = vunpack.c.l.b16 %v122
    %v383 = vunpack.c.l.b16 %v123
    %v384 = vunpack.c.l.b16 %v124
    %v385 = vunpack.c.l.b16 %v125
    %v386 = vunpack.c.l.b16 %v126
    %v387 = vunpack.c.l.b16 %v127
    %v388 = vunpack.c.l.b16 %v128
    %v389 = vunpack.c.l.b16 %v129
    %v390 = vunpack.c.l.b16 %v130
    %v391 = vunpack.c.l.b16 %v131
    %v392 = vunpack.c.l.b16 %v132
    %v393 = vunpack.c.l.b16 %v133
    %v394 = vunpack.c.l.b16 %v134
    %v395 = vunpack.c.l.b16 %v135
    %v396 = vunpack.c.l.b16 %v136
    %v397 = vunpack.c.l.b16 %v137
    %v398 = vunpack.c.l.b16 %v138
    %v399 = vunpack.c.l.b16 %v139
    %v400 = vunpack.c.l.b16 %v140
    %v401 = vunpack.c.l.b16 %v141
    %v402 = vunpack.c.l.b16 %v142
    %v403 = vunpack.c.l.b16 %v143
    %v404 = vunpack.c.l.b16 %v144
    %v405 = vunpack.c.l.b16 %v145
    %v406 = vunpack.c.l.b16 %v146
    %v407 = vunpack.c.l.b16 %v147
    %v408 = vunpack.c.l.b16 %v148
    %v409 = vunpack.c.l.b16 %v149
    %v410 = vunpack.c.l.b16 %v150
    %v411 = vunpack.c.l.b16 %v151
    %v412 = vunpack.c.l.b16 %v152
    %v413 = vunpack.c.l.b16 %v153
    %v414 = vunpack.c.l.b16 %v154
    %v415 = vunpack.c.l.b16 %v155
    %v416 = vunpack.c.l.b16 %v156
    %v417 = vunpack.c.l.b16 %v157
    %v418 = vunpack.c.l.b16 %v158
    %v419 = vunpack.c.l.b16 %v159
    %v420 = vunpack.c.l.b16 %v160
    %v421 = vunpack.c.l.b16 %v161
    %v422 = vunpack.c.l.b16 %v162
    %v423 = vunpack.c.l.b16 %v163
    %v424 = vunpack.c.l.b16 %v164
    %v425 = vunpack.c.l.b16 %v165
    %v426 = vunpack.c.l.b16 %v166
    %v427 = vunpack.c.l.b16 %v167
    %v428 = vunpack.c.l.b16 %v168
    %v429 = vunpack.c.l.b16 %v169
    %v430 = vunpack.c.l.b16 %v170
    %v431 = vunpack.c.l.b16 %v171
    %v432 = vunpack.c.l.b16 %v172
    %v433 = vunpack.c.l.b16 %v173
    %v434 = vunpack.c.l.b16 %v174
    %v435 = vunpack.c.l.b16 %v175
    %v436 = vunpack.c.l.b16 %v176
    %v437 = vunpack.c.l.b16 %v177
    %v438 = vunpack.c.l.b16 %v178
    %v439 = vunpack.c.l.b16 %v179
    %v440 = vunpack.c.l.b16 %v180
    %v441 = vunpack.c.l.b16 %v181
    %v442 = vunpack.c.l.b16 %v182
    %v443 = vunpack.c.l.b16 %v183
    %v444 = vunpack.c.l.b16 %v184
    %v445 = vunpack.c.l.b16 %v185
    %v446 = vunpack.c.l.b16 %v186
    %v447 = vunpack.c.l.b16 %v187
    %v448 = vunpack.c.l.b16 %v188
    %v449 = vunpack.c.l.b16 %v189
    %v450 = vunpack.c.l.b16 %v190
    %v451 = vunpack.c.l.b16 %v191
    %v452 = vunpack.c.l.b16 %v192
    %v453 = vunpack.c.l.b16 %v193
    %v454 = vunpack.c.l.b16 %v194
    %v455 = vunpack.c.l.b16 %v195
    %v456 = vunpack.c.l.b16 %v196
    %v457 = vunpack.c.l.b16 %v197
    %v458 = vunpack.c.l.b16 %v198
    %v459 = vunpack.c.l.b16 %v199
    %v460 = vunpack.c.l.b16 %v200
    %v461 = vunpack.c.l.b16 %v201
    %v462 = vunpack.c.l.b16 %v202
    %v463 = vunpack.c.l.b16 %v203
    %v464 = vunpack.c.l.b16 %v204
    %v465 = vunpack.c.l.b16 %v205
    %v466 = vunpack.c.l.b16 %v206
    %v467 = vunpack.c.l.b16 %v207
    %v468 = vunpack.c.l.b16 %v208
    %v469 = vunpack.c.l.b16 %v209
    %v470 = vunpack.c.l.b16 %v210
    %v471 = vunpack.c.l.b16 %v211
    %v472 = vunpack.c.l.b16 %v212
    %v473 = vunpack.c.l.b16 %v213
    %v474 = vunpack.c.l.b16 %v214
    %v475 = vunpack.c.l.b16 %v215
    %v476 = vunpack.c.l.b16 %v216
    %v477 = vunpack.c.l.b16 %v217
    %v478 = vunpack.c.l.b16 %v218
    %v479 = vunpack.c.l.b16 %v219
    %v480 = vunpack.c.l.b16 %v220
    %v481 = vunpack.c.l.b16 %v221
    %v482 = vunpack.c.l.b16 %v222
    %v483 = vunpack.c.l.b16 %v223
    %v484 = vunpack.c.l.b16 %v224
    %v485 = vunpack.c.l.b16 %v225
    %v486 = vunpack.c.l.b16 %v226
    %v487 = vunpack.c.l.b16 %v227
    %v488 = vunpack.c.l.b16 %v228
    %v489 = vunpack.c.l.b16 %v229
    %v490 = vunpack.c.l.b16 %v230
    %v491 = vunpack.c.l.b16 %v231
    %v492 = vunpack.c.l.b16 %v232
    %v493 = vunpack.c.l.b16 %v233
    %v494 = vunpack.c.l.b16 %v234
    %v495 = vunpack.c.l.b16 %v235
    %v496 = vunpack.c.l.b16 %v236
    %v497 = vunpack.c.l.b16 %v237
    %v498 = vunpack.c.l.b16 %v238
    %v499 = vunpack.c.l.b16 %v239
    %v500 = vunpack.c.l.b16 %v240
    %v501 = vpack.c.b16 %v374, %v373
    %v502 = vpack.c.b16 %v376, %v375
    %v503 = vpack.c.b16 %v378, %v377
    %v504 = vpack.c.b16 %v380, %v379
    %v505 = vpack.c.b16 %v382, %v381
    %v506 = vpack.c.b16 %v384, %v383
    %v507 = vpack.c.b16 %v386, %v385
    %v508 = vpack.c.b16 %v388, %v387
    %v509 = vpack.c.b16 %v390, %v389
    %v510 = vpack.c.b16 %v392, %v391
    %v511 = vpack.c.b16 %v394, %v393
    %v512 = vpack.c.b16 %v396, %v395
    %v513 = vpack.c.b16 %v398, %v397
    %v514 = vpack.c.b16 %v400, %v399
    %v515 = vpack.c.b16 %v402, %v401
    %v516 = vpack.c.b16 %v404, %v403
    %v517 = vpack.c.b16 %v406, %v405
    %v518 = vpack.c.b16 %v408, %v407
    %v519 = vpack.c.b16 %v410, %v409
    %v520 = vpack.c.b16 %v412, %v411
    %v521 = vpack.c.b16 %v414, %v413
    %v522 = vpack.c.b16 %v416, %v415
    %v523 = vpack.c.b16 %v418, %v417
    %v524 = vpack.c.b16 %v420, %v419
    %v525 = vpack.c.b16 %v422, %v421
    %v526 = vpack.c.b16 %v424, %v423
    %v527 = vpack.c.b16 %v426, %v425
    %v528 = vpack.c.b16 %v428, %v427
    %v529 = vpack.c.b16 %v430, %v429
    %v530 = vpack.c.b16 %v432, %v431
    %v531 = vpack.c.b16 %v434, %v433
    %v532 = vpack.c.b16 %v436, %v435
    %v533 = vpack.c.b16 %v438, %v437
    %v534 = vpack.c.b16 %v440, %v439
    %v535 = vpack.c.b16 %v442, %v441
    %v536 = vpack.c.b16 %v444, %v443
    %v537 = vpack.c.b16 %v446, %v445
    %v538 = vpack.c.b16 %v448, %v447
    %v539 = vpack.c.b16 %v450, %v449
    %v540 = vpack.c.b16 %v452, %v451
    %v541 = vpack.c.b16 %v454, %v453
    %v542 = vpack.c.b16 %v456, %v455
    %v543 = vpack.c.b16 %v458, %v457
    %v544 = vpack.c.b16 %v460, %v459
    %v545 = vpack.c.b16 %v462, %v461
    %v546 = vpack.c.b16 %v464, %v463
    %v547 = vpack.c.b16 %v466, %v465
    %v548 = vpack.c.b16 %v468, %v467
    %v549 = vpack.c.b16 %v470, %v469
    %v550 = vpack.c.b16 %v472, %v471
    %v551 = vpack.c.b16 %v474, %v473
    %v552 = vpack.c.b16 %v476, %v475
    %v553 = vpack.c.b16 %v478, %v477
    %v554 = vpack.c.b16 %v480, %v479
    %v555 = vpack.c.b16 %v482, %v481
    %v556 = vpack.c.b16 %v484, %v483
    %v557 = vpack.c.b16 %v486, %v485
    %v558 = vpack.c.b16 %v488, %v487
    %v559 = vpack.c.b16 %v490, %v489
    %v560 = vpack.c.b16 %v492, %v491
    %v561 = vpack.c.b16 %v494, %v493
    %v562 = vpack.c.b16 %v496, %v495
    %v563 = vpack.c.b16 %v498, %v497
    %v564 = vpack.c.b16 %v500, %v499
    %629 = vmatprep.subr.bf16.mxu0 0
    %630 = vmatpush1.bf16.msra.mxu0 %v501
    %631 = vmatprep.subr.bf16.mxu0 0
    %632 = vmatpush1.bf16.msra.mxu0 %v502
    %633 = vmatprep.subr.bf16.mxu0 0
    %634 = vmatpush1.bf16.msra.mxu0 %v503
    %635 = vmatprep.subr.bf16.mxu0 0
    %636 = vmatpush1.bf16.msra.mxu0 %v504
    %637 = vmatprep.subr.bf16.mxu0 0
    %638 = vmatpush1.bf16.msra.mxu0 %v505
    %639 = vmatprep.subr.bf16.mxu0 0
    %640 = vmatpush1.bf16.msra.mxu0 %v506
    %641 = vmatprep.subr.bf16.mxu0 0
    %642 = vmatpush1.bf16.msra.mxu0 %v507
    %643 = vmatprep.subr.bf16.mxu0 0
    %644 = vmatpush1.bf16.msra.mxu0 %v508
    %645 = vmatprep.subr.bf16.mxu0 0
    %646 = vmatpush1.bf16.msra.mxu0 %v509
    %647 = vmatprep.subr.bf16.mxu0 0
    %648 = vmatpush1.bf16.msra.mxu0 %v510
    %649 = vmatprep.subr.bf16.mxu0 0
    %650 = vmatpush1.bf16.msra.mxu0 %v511
    %651 = vmatprep.subr.bf16.mxu0 0
    %652 = vmatpush1.bf16.msra.mxu0 %v512
    %653 = vmatprep.subr.bf16.mxu0 0
    %654 = vmatpush1.bf16.msra.mxu0 %v513
    %655 = vmatprep.subr.bf16.mxu0 0
    %656 = vmatpush1.bf16.msra.mxu0 %v514
    %657 = vmatprep.subr.bf16.mxu0 0
    %658 = vmatpush1.bf16.msra.mxu0 %v515
    %659 = vmatprep.subr.bf16.mxu0 0
    %660 = vmatpush1.bf16.msra.mxu0 %v516
    %661 = vmatprep.mubr.bf16.mxu0 %v106
    %662 = vmatmul.mubr.bf16.gmra.mrb[0].mxu0 %v105
    %v663 = vpop.f32.mrb[0].mxu0
    %v664 = vadd.f32 %v244, %v663
    %v665 = vpop.f32.mrb[0].mxu0
    %v666 = vpop.f32.mrb[0].mxu0
    %v667 = vpop.f32.mrb[0].mxu0
    %668 = vdwg.mxu0
    %669 = vmatprep.subr.bf16.mxu0 0
    %670 = vmatpush1.bf16.msra.mxu0 %v517
    %671 = vmatprep.subr.bf16.mxu0 0
    %672 = vmatpush1.bf16.msra.mxu0 %v518
    %673 = vmatprep.subr.bf16.mxu0 0
    %674 = vmatpush1.bf16.msra.mxu0 %v519
    %675 = vmatprep.subr.bf16.mxu0 0
    %676 = vmatpush1.bf16.msra.mxu0 %v520
    %677 = vmatprep.subr.bf16.mxu0 0
    %678 = vmatpush1.bf16.msra.mxu0 %v521
    %679 = vmatprep.subr.bf16.mxu0 0
    %680 = vmatpush1.bf16.msra.mxu0 %v522
    %681 = vmatprep.subr.bf16.mxu0 0
    %682 = vmatpush1.bf16.msra.mxu0 %v523
    %683 = vmatprep.subr.bf16.mxu0 0
    %684 = vmatpush1.bf16.msra.mxu0 %v524
    %685 = vmatprep.subr.bf16.mxu0 0
    %686 = vmatpush1.bf16.msra.mxu0 %v525
    %687 = vmatprep.subr.bf16.mxu0 0
    %688 = vmatpush1.bf16.msra.mxu0 %v526
    %689 = vmatprep.subr.bf16.mxu0 0
    %690 = vmatpush1.bf16.msra.mxu0 %v527
    %691 = vmatprep.subr.bf16.mxu0 0
    %692 = vmatpush1.bf16.msra.mxu0 %v528
    %693 = vmatprep.subr.bf16.mxu0 0
    %694 = vmatpush1.bf16.msra.mxu0 %v529
    %695 = vmatprep.subr.bf16.mxu0 0
    %696 = vmatpush1.bf16.msra.mxu0 %v530
    %697 = vmatprep.subr.bf16.mxu0 0
    %698 = vmatpush1.bf16.msra.mxu0 %v531
    %699 = vmatprep.subr.bf16.mxu0 0
    %700 = vmatpush1.bf16.msra.mxu0 %v532
    %701 = vmatprep.mubr.bf16.mxu0 %v108
    %702 = vmatmul.mubr.bf16.gmra.mrb[0].mxu0 %v107
    %v703 = vpop.f32.mrb[0].mxu0
    %v704 = vadd.f32 %v664, %v703
    %v705 = vpop.f32.mrb[0].mxu0
    %v706 = vpop.f32.mrb[0].mxu0
    %v707 = vpop.f32.mrb[0].mxu0
    %708 = vdwg.mxu0
    %709 = vmatprep.subr.bf16.mxu0 0
    %710 = vmatpush1.bf16.msra.mxu0 %v533
    %711 = vmatprep.subr.bf16.mxu0 0
    %712 = vmatpush1.bf16.msra.mxu0 %v534
    %713 = vmatprep.subr.bf16.mxu0 0
    %714 = vmatpush1.bf16.msra.mxu0 %v535
    %715 = vmatprep.subr.bf16.mxu0 0
    %716 = vmatpush1.bf16.msra.mxu0 %v536
    %717 = vmatprep.subr.bf16.mxu0 0
    %718 = vmatpush1.bf16.msra.mxu0 %v537
    %719 = vmatprep.subr.bf16.mxu0 0
    %720 = vmatpush1.bf16.msra.mxu0 %v538
    %721 = vmatprep.subr.bf16.mxu0 0
    %722 = vmatpush1.bf16.msra.mxu0 %v539
    %723 = vmatprep.subr.bf16.mxu0 0
    %724 = vmatpush1.bf16.msra.mxu0 %v540
    %725 = vmatprep.subr.bf16.mxu0 0
    %726 = vmatpush1.bf16.msra.mxu0 %v541
    %727 = vmatprep.subr.bf16.mxu0 0
    %728 = vmatpush1.bf16.msra.mxu0 %v542
    %729 = vmatprep.subr.bf16.mxu0 0
    %730 = vmatpush1.bf16.msra.mxu0 %v543
    %731 = vmatprep.subr.bf16.mxu0 0
    %732 = vmatpush1.bf16.msra.mxu0 %v544
    %733 = vmatprep.subr.bf16.mxu0 0
    %734 = vmatpush1.bf16.msra.mxu0 %v545
    %735 = vmatprep.subr.bf16.mxu0 0
    %736 = vmatpush1.bf16.msra.mxu0 %v546
    %737 = vmatprep.subr.bf16.mxu0 0
    %738 = vmatpush1.bf16.msra.mxu0 %v547
    %739 = vmatprep.subr.bf16.mxu0 0
    %740 = vmatpush1.bf16.msra.mxu0 %v548
    %741 = vmatprep.mubr.bf16.mxu0 %v110
    %742 = vmatmul.mubr.bf16.gmra.mrb[0].mxu0 %v109
    %v743 = vpop.f32.mrb[0].mxu0
    %v744 = vadd.f32 %v704, %v743
    %v745 = vpop.f32.mrb[0].mxu0
    %v746 = vpop.f32.mrb[0].mxu0
    %v747 = vpop.f32.mrb[0].mxu0
    %748 = vdwg.mxu0
    %749 = vmatprep.subr.bf16.mxu0 0
    %750 = vmatpush1.bf16.msra.mxu0 %v549
    %751 = vmatprep.subr.bf16.mxu0 0
    %752 = vmatpush1.bf16.msra.mxu0 %v550
    %753 = vmatprep.subr.bf16.mxu0 0
    %754 = vmatpush1.bf16.msra.mxu0 %v551
    %755 = vmatprep.subr.bf16.mxu0 0
    %756 = vmatpush1.bf16.msra.mxu0 %v552
    %757 = vmatprep.subr.bf16.mxu0 0
    %758 = vmatpush1.bf16.msra.mxu0 %v553
    %759 = vmatprep.subr.bf16.mxu0 0
    %760 = vmatpush1.bf16.msra.mxu0 %v554
    %761 = vmatprep.subr.bf16.mxu0 0
    %762 = vmatpush1.bf16.msra.mxu0 %v555
    %763 = vmatprep.subr.bf16.mxu0 0
    %764 = vmatpush1.bf16.msra.mxu0 %v556
    %765 = vmatprep.subr.bf16.mxu0 0
    %766 = vmatpush1.bf16.msra.mxu0 %v557
    %767 = vmatprep.subr.bf16.mxu0 0
    %768 = vmatpush1.bf16.msra.mxu0 %v558
    %769 = vmatprep.subr.bf16.mxu0 0
    %770 = vmatpush1.bf16.msra.mxu0 %v559
    %771 = vmatprep.subr.bf16.mxu0 0
    %772 = vmatpush1.bf16.msra.mxu0 %v560
    %773 = vmatprep.subr.bf16.mxu0 0
    %774 = vmatpush1.bf16.msra.mxu0 %v561
    %775 = vmatprep.subr.bf16.mxu0 0
    %776 = vmatpush1.bf16.msra.mxu0 %v562
    %777 = vmatprep.subr.bf16.mxu0 0
    %778 = vmatpush1.bf16.msra.mxu0 %v563
    %779 = vmatprep.subr.bf16.mxu0 0
    %780 = vmatpush1.bf16.msra.mxu0 %v564
    %781 = vmatprep.mubr.bf16.mxu0 %v112
    %782 = vmatmul.mubr.bf16.gmra.mrb[0].mxu0 %v111
    %v783 = vpop.f32.mrb[0].mxu0
    %v784 = vadd.f32 %v744, %v783
    %v785 = vpop.f32.mrb[0].mxu0
    %v786 = vpop.f32.mrb[0].mxu0
    %v787 = vpop.f32.mrb[0].mxu0
    %788 = vdwg.mxu0
    %v789 = vmax.f32 %v784, 0.0
    %v790 = vpack.c.bf16 %v789, %v789
    %v791 = vld [vmem:[#allocation7] sm:$0xf]
    %v792 = vld [vmem:[#allocation7 + $0x4] sm:$0xf]
    %v793 = vld [vmem:[#allocation7 + $0x8] sm:$0xf]
    %v794 = vld [vmem:[#allocation7 + $0xc] sm:$0xf]
    %v795 = vld [vmem:[#allocation7 + $0x10] sm:$0xf]
    %v796 = vld [vmem:[#allocation7 + $0x14] sm:$0xf]
    %v797 = vld [vmem:[#allocation7 + $0x18] sm:$0xf]
    %v798 = vld [vmem:[#allocation7 + $0x1c] sm:$0xf]
    %v799 = vld [vmem:[#allocation7 + $0x20] sm:$0xf]
    %v800 = vld [vmem:[#allocation7 + $0x24] sm:$0xf]
    %v801 = vld [vmem:[#allocation7 + $0x28] sm:$0xf]
    %v802 = vld [vmem:[#allocation7 + $0x2c] sm:$0xf]
    %v803 = vld [vmem:[#allocation7 + $0x30] sm:$0xf]
    %v804 = vld [vmem:[#allocation7 + $0x34] sm:$0xf]
    %v805 = vld [vmem:[#allocation7 + $0x38] sm:$0xf]
    %v806 = vld [vmem:[#allocation7 + $0x3c] sm:$0xf]
    %v807 = vlaneseq
    %v808 = vshrl.u32 %v807, 7
    %v809 = vsub.s32 1, %v808
    %v810 = vrot.slane %v58, %v809
    %v827 = vunpack.c.l.b16 %v791
    %v828 = vunpack.c.l.b16 %v792
    %v829 = vunpack.c.l.b16 %v793
    %v830 = vunpack.c.l.b16 %v794
    %v831 = vunpack.c.l.b16 %v795
    %v832 = vunpack.c.l.b16 %v796
    %v833 = vunpack.c.l.b16 %v797
    %v834 = vunpack.c.l.b16 %v798
    %v835 = vunpack.c.l.b16 %v799
    %v836 = vunpack.c.l.b16 %v800
    %v837 = vunpack.c.l.b16 %v801
    %v838 = vunpack.c.l.b16 %v802
    %v839 = vunpack.c.l.b16 %v803
    %v840 = vunpack.c.l.b16 %v804
    %v841 = vunpack.c.l.b16 %v805
    %v842 = vunpack.c.l.b16 %v806
    %v843 = vpack.c.b16 %v828, %v827
    %v844 = vpack.c.b16 %v830, %v829
    %v845 = vpack.c.b16 %v832, %v831
    %v846 = vpack.c.b16 %v834, %v833
    %v847 = vpack.c.b16 %v836, %v835
    %v848 = vpack.c.b16 %v838, %v837
    %v849 = vpack.c.b16 %v840, %v839
    %v850 = vpack.c.b16 %v842, %v841
    %859 = vmatprep.subr.bf16.mxu0 0
    %860 = vmatpush1.bf16.msra.mxu0 %v843
    %861 = vmatprep.subr.bf16.mxu0 0
    %862 = vmatpush1.bf16.msra.mxu0 %v844
    %863 = vmatprep.subr.bf16.mxu0 0
    %864 = vmatpush1.bf16.msra.mxu0 %v845
    %865 = vmatprep.subr.bf16.mxu0 0
    %866 = vmatpush1.bf16.msra.mxu0 %v846
    %867 = vmatprep.subr.bf16.mxu0 0
    %868 = vmatpush1.bf16.msra.mxu0 %v847
    %869 = vmatprep.subr.bf16.mxu0 0
    %870 = vmatpush1.bf16.msra.mxu0 %v848
    %871 = vmatprep.subr.bf16.mxu0 0
    %872 = vmatpush1.bf16.msra.mxu0 %v849
    %873 = vmatprep.subr.bf16.mxu0 0
    %874 = vmatpush1.bf16.msra.mxu0 %v850
    %875 = vmatprep.subr.bf16.mxu0 0
    %876 = vmatpush1.bf16.msra.mxu0 0
    %877 = vmatprep.subr.bf16.mxu0 0
    %878 = vmatpush1.bf16.msra.mxu0 0
    %879 = vmatprep.subr.bf16.mxu0 0
    %880 = vmatpush1.bf16.msra.mxu0 0
    %881 = vmatprep.subr.bf16.mxu0 0
    %882 = vmatpush1.bf16.msra.mxu0 0
    %883 = vmatprep.subr.bf16.mxu0 0
    %884 = vmatpush1.bf16.msra.mxu0 0
    %885 = vmatprep.subr.bf16.mxu0 0
    %886 = vmatpush1.bf16.msra.mxu0 0
    %887 = vmatprep.subr.bf16.mxu0 0
    %888 = vmatpush1.bf16.msra.mxu0 0
    %889 = vmatprep.subr.bf16.mxu0 0
    %890 = vmatpush1.bf16.msra.mxu0 0
    %891 = vmatprep.mubr.bf16.mxu0 0
    %892 = vmatmul.mubr.bf16.gmra.mrb[0].mxu0 %v790
    %v893 = vpop.f32.mrb[0].mxu0
    %v894 = vadd.f32 %v810, %v893
    %v895 = vpop.f32.mrb[0].mxu0
    %v896 = vpop.f32.mrb[0].mxu0
    %v897 = vpop.f32.mrb[0].mxu0
    %898 = vdwg.mxu0
    %v899 = vmax.f32 %v894, 0.0
    %v900 = vpack.c.bf16 %v899, %v899
    %s901 = scalar_lea.vmem [#allocation7], 64
    %v902 = vld [vmem:[%s901] sm:$0xf]
    %v903 = vld [vmem:[%s901 + $0x4] sm:$0xf]
    %v904 = vld [vmem:[%s901 + $0x8] sm:$0xf]
    %v905 = vld [vmem:[%s901 + $0xc] sm:$0xf]
    %v906 = vld [vmem:[%s901 + $0x10] sm:$0xf]
    %v907 = vld [vmem:[%s901 + $0x14] sm:$0xf]
    %v908 = vld [vmem:[%s901 + $0x18] sm:$0xf]
    %v909 = vld [vmem:[%s901 + $0x1c] sm:$0xf]
    %v910 = vld [vmem:[%s901 + $0x20] sm:$0xf]
    %v911 = vld [vmem:[%s901 + $0x24] sm:$0xf]
    %v912 = vld [vmem:[%s901 + $0x28] sm:$0xf]
    %v913 = vld [vmem:[%s901 + $0x2c] sm:$0xf]
    %v914 = vld [vmem:[%s901 + $0x30] sm:$0xf]
    %v915 = vld [vmem:[%s901 + $0x34] sm:$0xf]
    %v916 = vld [vmem:[%s901 + $0x38] sm:$0xf]
    %v917 = vld [vmem:[%s901 + $0x3c] sm:$0xf]
    %v918 = vlaneseq
    %v919 = vshrl.u32 %v918, 7
    %v920 = vsub.s32 2, %v919
    %v921 = vrot.slane %v58, %v920
    %v938 = vunpack.c.l.b16 %v902
    %v939 = vunpack.c.l.b16 %v903
    %v940 = vunpack.c.l.b16 %v904
    %v941 = vunpack.c.l.b16 %v905
    %v942 = vunpack.c.l.b16 %v906
    %v943 = vunpack.c.l.b16 %v907
    %v944 = vunpack.c.l.b16 %v908
    %v945 = vunpack.c.l.b16 %v909
    %v946 = vunpack.c.l.b16 %v910
    %v947 = vunpack.c.l.b16 %v911
    %v948 = vunpack.c.l.b16 %v912
    %v949 = vunpack.c.l.b16 %v913
    %v950 = vunpack.c.l.b16 %v914
    %v951 = vunpack.c.l.b16 %v915
    %v952 = vunpack.c.l.b16 %v916
    %v953 = vunpack.c.l.b16 %v917
    %v954 = vpack.c.b16 %v939, %v938
    %v955 = vpack.c.b16 %v941, %v940
    %v956 = vpack.c.b16 %v943, %v942
    %v957 = vpack.c.b16 %v945, %v944
    %v958 = vpack.c.b16 %v947, %v946
    %v959 = vpack.c.b16 %v949, %v948
    %v960 = vpack.c.b16 %v951, %v950
    %v961 = vpack.c.b16 %v953, %v952
    %970 = vmatprep.subr.bf16.mxu0 0
    %971 = vmatpush1.bf16.msra.mxu0 %v954
    %972 = vmatprep.subr.bf16.mxu0 0
    %973 = vmatpush1.bf16.msra.mxu0 %v955
    %974 = vmatprep.subr.bf16.mxu0 0
    %975 = vmatpush1.bf16.msra.mxu0 %v956
    %976 = vmatprep.subr.bf16.mxu0 0
    %977 = vmatpush1.bf16.msra.mxu0 %v957
    %978 = vmatprep.subr.bf16.mxu0 0
    %979 = vmatpush1.bf16.msra.mxu0 %v958
    %980 = vmatprep.subr.bf16.mxu0 0
    %981 = vmatpush1.bf16.msra.mxu0 %v959
    %982 = vmatprep.subr.bf16.mxu0 0
    %983 = vmatpush1.bf16.msra.mxu0 %v960
    %984 = vmatprep.subr.bf16.mxu0 0
    %985 = vmatpush1.bf16.msra.mxu0 %v961
    %986 = vmatprep.subr.bf16.mxu0 0
    %987 = vmatpush1.bf16.msra.mxu0 0
    %988 = vmatprep.subr.bf16.mxu0 0
    %989 = vmatpush1.bf16.msra.mxu0 0
    %990 = vmatprep.subr.bf16.mxu0 0
    %991 = vmatpush1.bf16.msra.mxu0 0
    %992 = vmatprep.subr.bf16.mxu0 0
    %993 = vmatpush1.bf16.msra.mxu0 0
    %994 = vmatprep.subr.bf16.mxu0 0
    %995 = vmatpush1.bf16.msra.mxu0 0
    %996 = vmatprep.subr.bf16.mxu0 0
    %997 = vmatpush1.bf16.msra.mxu0 0
    %998 = vmatprep.subr.bf16.mxu0 0
    %999 = vmatpush1.bf16.msra.mxu0 0
    %1000 = vmatprep.subr.bf16.mxu0 0
    %1001 = vmatpush1.bf16.msra.mxu0 0
    %1002 = vmatprep.mubr.bf16.mxu0 0
    %1003 = vmatmul.mubr.bf16.gmra.mrb[0].mxu0 %v900
    %v1004 = vpop.f32.mrb[0].mxu0
    %v1005 = vadd.f32 %v921, %v1004
    %v1006 = vpop.f32.mrb[0].mxu0
    %v1007 = vpop.f32.mrb[0].mxu0
    %v1008 = vpop.f32.mrb[0].mxu0
    %1009 = vdwg.mxu0
    %v1010 = vmax.f32 %v1005, 0.0
    %v1011 = vpack.c.bf16 %v1010, %v1010
    %s1012 = scalar_lea.vmem [#allocation7], 128
    %v1013 = vld [vmem:[%s1012] sm:$0xf]
    %v1014 = vld [vmem:[%s1012 + $0x4] sm:$0xf]
    %v1015 = vld [vmem:[%s1012 + $0x8] sm:$0xf]
    %v1016 = vld [vmem:[%s1012 + $0xc] sm:$0xf]
    %v1017 = vld [vmem:[%s1012 + $0x10] sm:$0xf]
    %v1018 = vld [vmem:[%s1012 + $0x14] sm:$0xf]
    %v1019 = vld [vmem:[%s1012 + $0x18] sm:$0xf]
    %v1020 = vld [vmem:[%s1012 + $0x1c] sm:$0xf]
    %v1021 = vld [vmem:[%s1012 + $0x20] sm:$0xf]
    %v1022 = vld [vmem:[%s1012 + $0x24] sm:$0xf]
    %v1023 = vld [vmem:[%s1012 + $0x28] sm:$0xf]
    %v1024 = vld [vmem:[%s1012 + $0x2c] sm:$0xf]
    %v1025 = vld [vmem:[%s1012 + $0x30] sm:$0xf]
    %v1026 = vld [vmem:[%s1012 + $0x34] sm:$0xf]
    %v1027 = vld [vmem:[%s1012 + $0x38] sm:$0xf]
    %v1028 = vld [vmem:[%s1012 + $0x3c] sm:$0xf]
    %v1029 = vlaneseq
    %v1030 = vshrl.u32 %v1029, 7
    %v1031 = vsub.s32 3, %v1030
    %v1032 = vrot.slane %v58, %v1031
    %v1049 = vunpack.c.l.b16 %v1013
    %v1050 = vunpack.c.l.b16 %v1014
    %v1051 = vunpack.c.l.b16 %v1015
    %v1052 = vunpack.c.l.b16 %v1016
    %v1053 = vunpack.c.l.b16 %v1017
    %v1054 = vunpack.c.l.b16 %v1018
    %v1055 = vunpack.c.l.b16 %v1019
    %v1056 = vunpack.c.l.b16 %v1020
    %v1057 = vunpack.c.l.b16 %v1021
    %v1058 = vunpack.c.l.b16 %v1022
    %v1059 = vunpack.c.l.b16 %v1023
    %v1060 = vunpack.c.l.b16 %v1024
    %v1061 = vunpack.c.l.b16 %v1025
    %v1062 = vunpack.c.l.b16 %v1026
    %v1063 = vunpack.c.l.b16 %v1027
    %v1064 = vunpack.c.l.b16 %v1028
    %v1065 = vpack.c.b16 %v1050, %v1049
    %v1066 = vpack.c.b16 %v1052, %v1051
    %v1067 = vpack.c.b16 %v1054, %v1053
    %v1068 = vpack.c.b16 %v1056, %v1055
    %v1069 = vpack.c.b16 %v1058, %v1057
    %v1070 = vpack.c.b16 %v1060, %v1059
    %v1071 = vpack.c.b16 %v1062, %v1061
    %v1072 = vpack.c.b16 %v1064, %v1063
    %1081 = vmatprep.subr.bf16.mxu0 0
    %1082 = vmatpush1.bf16.msra.mxu0 %v1065
    %1083 = vmatprep.subr.bf16.mxu0 0
    %1084 = vmatpush1.bf16.msra.mxu0 %v1066
    %1085 = vmatprep.subr.bf16.mxu0 0
    %1086 = vmatpush1.bf16.msra.mxu0 %v1067
    %1087 = vmatprep.subr.bf16.mxu0 0
    %1088 = vmatpush1.bf16.msra.mxu0 %v1068
    %1089 = vmatprep.subr.bf16.mxu0 0
    %1090 = vmatpush1.bf16.msra.mxu0 %v1069
    %1091 = vmatprep.subr.bf16.mxu0 0
    %1092 = vmatpush1.bf16.msra.mxu0 %v1070
    %1093 = vmatprep.subr.bf16.mxu0 0
    %1094 = vmatpush1.bf16.msra.mxu0 %v1071
    %1095 = vmatprep.subr.bf16.mxu0 0
    %1096 = vmatpush1.bf16.msra.mxu0 %v1072
    %1097 = vmatprep.subr.bf16.mxu0 0
    %1098 = vmatpush1.bf16.msra.mxu0 0
    %1099 = vmatprep.subr.bf16.mxu0 0
    %1100 = vmatpush1.bf16.msra.mxu0 0
    %1101 = vmatprep.subr.bf16.mxu0 0
    %1102 = vmatpush1.bf16.msra.mxu0 0
    %1103 = vmatprep.subr.bf16.mxu0 0
    %1104 = vmatpush1.bf16.msra.mxu0 0
    %1105 = vmatprep.subr.bf16.mxu0 0
    %1106 = vmatpush1.bf16.msra.mxu0 0
    %1107 = vmatprep.subr.bf16.mxu0 0
    %1108 = vmatpush1.bf16.msra.mxu0 0
    %1109 = vmatprep.subr.bf16.mxu0 0
    %1110 = vmatpush1.bf16.msra.mxu0 0
    %1111 = vmatprep.subr.bf16.mxu0 0
    %1112 = vmatpush1.bf16.msra.mxu0 0
    %1113 = vmatprep.mubr.bf16.mxu0 0
    %1114 = vmatmul.mubr.bf16.gmra.mrb[0].mxu0 %v1011
    %v1115 = vpop.f32.mrb[0].mxu0
    %v1116 = vadd.f32 %v1032, %v1115
    %v1117 = vpop.f32.mrb[0].mxu0
    %v1118 = vpop.f32.mrb[0].mxu0
    %v1119 = vpop.f32.mrb[0].mxu0
    %1120 = vdwg.mxu0
    %v1121 = vmax.f32 %v1116, 0.0
    %v1122 = vpack.c.bf16 %v1121, %v1121
    %s1123 = scalar_lea.vmem [#allocation7], 192
    %v1124 = vld [vmem:[%s1123] sm:$0xf]
    %v1125 = vld [vmem:[%s1123 + $0x4] sm:$0xf]
    %v1126 = vld [vmem:[%s1123 + $0x8] sm:$0xf]
    %v1127 = vld [vmem:[%s1123 + $0xc] sm:$0xf]
    %v1128 = vld [vmem:[%s1123 + $0x10] sm:$0xf]
    %v1129 = vld [vmem:[%s1123 + $0x14] sm:$0xf]
    %v1130 = vld [vmem:[%s1123 + $0x18] sm:$0xf]
    %v1131 = vld [vmem:[%s1123 + $0x1c] sm:$0xf]
    %v1132 = vld [vmem:[%s1123 + $0x20] sm:$0xf]
    %v1133 = vld [vmem:[%s1123 + $0x24] sm:$0xf]
    %v1134 = vld [vmem:[%s1123 + $0x28] sm:$0xf]
    %v1135 = vld [vmem:[%s1123 + $0x2c] sm:$0xf]
    %v1136 = vld [vmem:[%s1123 + $0x30] sm:$0xf]
    %v1137 = vld [vmem:[%s1123 + $0x34] sm:$0xf]
    %v1138 = vld [vmem:[%s1123 + $0x38] sm:$0xf]
    %v1139 = vld [vmem:[%s1123 + $0x3c] sm:$0xf]
    %v1140 = vlaneseq
    %v1141 = vshrl.u32 %v1140, 7
    %v1142 = vsub.s32 4, %v1141
    %v1143 = vrot.slane %v58, %v1142
    %v1160 = vunpack.c.l.b16 %v1124
    %v1161 = vunpack.c.l.b16 %v1125
    %v1162 = vunpack.c.l.b16 %v1126
    %v1163 = vunpack.c.l.b16 %v1127
    %v1164 = vunpack.c.l.b16 %v1128
    %v1165 = vunpack.c.l.b16 %v1129
    %v1166 = vunpack.c.l.b16 %v1130
    %v1167 = vunpack.c.l.b16 %v1131
    %v1168 = vunpack.c.l.b16 %v1132
    %v1169 = vunpack.c.l.b16 %v1133
    %v1170 = vunpack.c.l.b16 %v1134
    %v1171 = vunpack.c.l.b16 %v1135
    %v1172 = vunpack.c.l.b16 %v1136
    %v1173 = vunpack.c.l.b16 %v1137
    %v1174 = vunpack.c.l.b16 %v1138
    %v1175 = vunpack.c.l.b16 %v1139
    %v1176 = vpack.c.b16 %v1161, %v1160
    %v1177 = vpack.c.b16 %v1163, %v1162
    %v1178 = vpack.c.b16 %v1165, %v1164
    %v1179 = vpack.c.b16 %v1167, %v1166
    %v1180 = vpack.c.b16 %v1169, %v1168
    %v1181 = vpack.c.b16 %v1171, %v1170
    %v1182 = vpack.c.b16 %v1173, %v1172
    %v1183 = vpack.c.b16 %v1175, %v1174
    %1192 = vmatprep.subr.bf16.mxu0 0
    %1193 = vmatpush1.bf16.msra.mxu0 %v1176
    %1194 = vmatprep.subr.bf16.mxu0 0
    %1195 = vmatpush1.bf16.msra.mxu0 %v1177
    %1196 = vmatprep.subr.bf16.mxu0 0
    %1197 = vmatpush1.bf16.msra.mxu0 %v1178
    %1198 = vmatprep.subr.bf16.mxu0 0
    %1199 = vmatpush1.bf16.msra.mxu0 %v1179
    %1200 = vmatprep.subr.bf16.mxu0 0
    %1201 = vmatpush1.bf16.msra.mxu0 %v1180
    %1202 = vmatprep.subr.bf16.mxu0 0
    %1203 = vmatpush1.bf16.msra.mxu0 %v1181
    %1204 = vmatprep.subr.bf16.mxu0 0
    %1205 = vmatpush1.bf16.msra.mxu0 %v1182
    %1206 = vmatprep.subr.bf16.mxu0 0
    %1207 = vmatpush1.bf16.msra.mxu0 %v1183
    %1208 = vmatprep.subr.bf16.mxu0 0
    %1209 = vmatpush1.bf16.msra.mxu0 0
    %1210 = vmatprep.subr.bf16.mxu0 0
    %1211 = vmatpush1.bf16.msra.mxu0 0
    %1212 = vmatprep.subr.bf16.mxu0 0
    %1213 = vmatpush1.bf16.msra.mxu0 0
    %1214 = vmatprep.subr.bf16.mxu0 0
    %1215 = vmatpush1.bf16.msra.mxu0 0
    %1216 = vmatprep.subr.bf16.mxu0 0
    %1217 = vmatpush1.bf16.msra.mxu0 0
    %1218 = vmatprep.subr.bf16.mxu0 0
    %1219 = vmatpush1.bf16.msra.mxu0 0
    %1220 = vmatprep.subr.bf16.mxu0 0
    %1221 = vmatpush1.bf16.msra.mxu0 0
    %1222 = vmatprep.subr.bf16.mxu0 0
    %1223 = vmatpush1.bf16.msra.mxu0 0
    %1224 = vmatprep.mubr.bf16.mxu0 0
    %1225 = vmatmul.mubr.bf16.gmra.mrb[0].mxu0 %v1122
    %v1226 = vpop.f32.mrb[0].mxu0
    %v1227 = vadd.f32 %v1143, %v1226
    %v1228 = vpop.f32.mrb[0].mxu0
    %v1229 = vpop.f32.mrb[0].mxu0
    %v1230 = vpop.f32.mrb[0].mxu0
    %1231 = vdwg.mxu0
    %v1232 = vmax.f32 %v1227, 0.0
    %v1233 = vpack.c.bf16 %v1232, %v1232
    %s1234 = scalar_lea.vmem [#allocation7], 256
    %v1235 = vld [vmem:[%s1234] sm:$0xf]
    %v1236 = vld [vmem:[%s1234 + $0x4] sm:$0xf]
    %v1237 = vld [vmem:[%s1234 + $0x8] sm:$0xf]
    %v1238 = vld [vmem:[%s1234 + $0xc] sm:$0xf]
    %v1239 = vld [vmem:[%s1234 + $0x10] sm:$0xf]
    %v1240 = vld [vmem:[%s1234 + $0x14] sm:$0xf]
    %v1241 = vld [vmem:[%s1234 + $0x18] sm:$0xf]
    %v1242 = vld [vmem:[%s1234 + $0x1c] sm:$0xf]
    %v1243 = vld [vmem:[%s1234 + $0x20] sm:$0xf]
    %v1244 = vld [vmem:[%s1234 + $0x24] sm:$0xf]
    %v1245 = vld [vmem:[%s1234 + $0x28] sm:$0xf]
    %v1246 = vld [vmem:[%s1234 + $0x2c] sm:$0xf]
    %v1247 = vld [vmem:[%s1234 + $0x30] sm:$0xf]
    %v1248 = vld [vmem:[%s1234 + $0x34] sm:$0xf]
    %v1249 = vld [vmem:[%s1234 + $0x38] sm:$0xf]
    %v1250 = vld [vmem:[%s1234 + $0x3c] sm:$0xf]
    %v1251 = vlaneseq
    %v1252 = vshrl.u32 %v1251, 7
    %v1253 = vsub.s32 5, %v1252
    %v1254 = vrot.slane %v58, %v1253
    %v1271 = vunpack.c.l.b16 %v1235
    %v1272 = vunpack.c.l.b16 %v1236
    %v1273 = vunpack.c.l.b16 %v1237
    %v1274 = vunpack.c.l.b16 %v1238
    %v1275 = vunpack.c.l.b16 %v1239
    %v1276 = vunpack.c.l.b16 %v1240
    %v1277 = vunpack.c.l.b16 %v1241
    %v1278 = vunpack.c.l.b16 %v1242
    %v1279 = vunpack.c.l.b16 %v1243
    %v1280 = vunpack.c.l.b16 %v1244
    %v1281 = vunpack.c.l.b16 %v1245
    %v1282 = vunpack.c.l.b16 %v1246
    %v1283 = vunpack.c.l.b16 %v1247
    %v1284 = vunpack.c.l.b16 %v1248
    %v1285 = vunpack.c.l.b16 %v1249
    %v1286 = vunpack.c.l.b16 %v1250
    %v1287 = vpack.c.b16 %v1272, %v1271
    %v1288 = vpack.c.b16 %v1274, %v1273
    %v1289 = vpack.c.b16 %v1276, %v1275
    %v1290 = vpack.c.b16 %v1278, %v1277
    %v1291 = vpack.c.b16 %v1280, %v1279
    %v1292 = vpack.c.b16 %v1282, %v1281
    %v1293 = vpack.c.b16 %v1284, %v1283
    %v1294 = vpack.c.b16 %v1286, %v1285
    %1303 = vmatprep.subr.bf16.mxu0 0
    %1304 = vmatpush1.bf16.msra.mxu0 %v1287
    %1305 = vmatprep.subr.bf16.mxu0 0
    %1306 = vmatpush1.bf16.msra.mxu0 %v1288
    %1307 = vmatprep.subr.bf16.mxu0 0
    %1308 = vmatpush1.bf16.msra.mxu0 %v1289
    %1309 = vmatprep.subr.bf16.mxu0 0
    %1310 = vmatpush1.bf16.msra.mxu0 %v1290
    %1311 = vmatprep.subr.bf16.mxu0 0
    %1312 = vmatpush1.bf16.msra.mxu0 %v1291
    %1313 = vmatprep.subr.bf16.mxu0 0
    %1314 = vmatpush1.bf16.msra.mxu0 %v1292
    %1315 = vmatprep.subr.bf16.mxu0 0
    %1316 = vmatpush1.bf16.msra.mxu0 %v1293
    %1317 = vmatprep.subr.bf16.mxu0 0
    %1318 = vmatpush1.bf16.msra.mxu0 %v1294
    %1319 = vmatprep.subr.bf16.mxu0 0
    %1320 = vmatpush1.bf16.msra.mxu0 0
    %1321 = vmatprep.subr.bf16.mxu0 0
    %1322 = vmatpush1.bf16.msra.mxu0 0
    %1323 = vmatprep.subr.bf16.mxu0 0
    %1324 = vmatpush1.bf16.msra.mxu0 0
    %1325 = vmatprep.subr.bf16.mxu0 0
    %1326 = vmatpush1.bf16.msra.mxu0 0
    %1327 = vmatprep.subr.bf16.mxu0 0
    %1328 = vmatpush1.bf16.msra.mxu0 0
    %1329 = vmatprep.subr.bf16.mxu0 0
    %1330 = vmatpush1.bf16.msra.mxu0 0
    %1331 = vmatprep.subr.bf16.mxu0 0
    %1332 = vmatpush1.bf16.msra.mxu0 0
    %1333 = vmatprep.subr.bf16.mxu0 0
    %1334 = vmatpush1.bf16.msra.mxu0 0
    %1335 = vmatprep.mubr.bf16.mxu0 0
    %1336 = vmatmul.mubr.bf16.gmra.mrb[0].mxu0 %v1233
    %v1337 = vpop.f32.mrb[0].mxu0
    %v1338 = vadd.f32 %v1254, %v1337
    %v1339 = vpop.f32.mrb[0].mxu0
    %v1340 = vpop.f32.mrb[0].mxu0
    %v1341 = vpop.f32.mrb[0].mxu0
    %1342 = vdwg.mxu0
    %v1343 = vadd.f32 %v1338, %v1232
    %1344 = vst [vmem:[#allocation8] sm:$0x3] %v1343
    // Predicated region
    $region30: #{tpu_custom_call.1} parent=1 // pred_check
      _
    $region31: #{tpu_custom_call.1} parent=1 // pred_check_branch
      %1346 = sbr.rel (0) target = $region33
    $region32: #{tpu_custom_call.1} parent=1 // pred_region
      %s1348 = ssub.s32 32, 32
      %1349 = vsyncadd [#allocation4], %s1348
      %s1351 = sshll.u32 [#allocation8], 4
      %s1352 = int_to_ptr.vmem [resolvable:$true] %s1351
      %1354 = dma.vmem_to_hbm [thread:$0]  %s1352, 32, %s4, [#allocation4]
    $region33: #{tpu_custom_call.1} parent=1 // pred_fallthru
      _
    // Predicated region
    $region34: #{tpu_custom_call.1} parent=1 // pred_check
      _
    $region35: #{tpu_custom_call.1} parent=1 // pred_check_branch
      %1356 = sbr.rel (0) target = $region37
    $region36: #{tpu_custom_call.1} parent=1 // pred_region
      %1357 = dma.done [#allocation4], 32
    $region37: #{tpu_custom_call.1} parent=1 // pred_fallthru
      _
    %1358 = vsyncpa [#allocation3], 1
    %1359 = vsyncpa [#allocation6], 1
    %1360 = vsyncpa [#allocation4], 1

</llo_original>
